<compile_context>
chip_gen: v7x
topology: tpu7x:2x2x1
jax: 0.10.0
libtpu: 0.0.40
codegen_flags: <defaults>
</compile_context>

<pallas_src>
import functools

import jax
import jax.numpy as jnp
from jax.experimental import pallas as pl
from jax.experimental.pallas import tpu as pltpu

BN_EPS = 1e-5
LANE = 128


# ----------------------------------------------------------------------------
# small helpers
# ----------------------------------------------------------------------------
def _gelu(x):
    # tanh-approximate GELU (EUP tanh/exp); matches erf GELU to ~1e-3 abs.
    return jax.nn.gelu(x, approximate=True)


def _round_up(x, m):
    return (x + m - 1) // m * m


def _pad_dim(a, axis, target):
    cur = a.shape[axis]
    if cur == target:
        return a
    cfg = [(0, 0)] * a.ndim
    cfg[axis] = (0, target - cur)
    return jnp.pad(a, cfg)


def _fold_bn(w, b, gamma, beta, mean, var, post_scale=None):
    """Fold eval-mode BatchNorm2d (and optional per-channel post-scale, e.g.
    LayerScale) into a (K, Cout) weight and (Cout,) bias."""
    s = gamma * jax.lax.rsqrt(var + BN_EPS)
    shift = (b - mean) * s + beta
    if post_scale is not None:
        s = s * post_scale
        shift = shift * post_scale
    return w * s[None, :], shift


@functools.lru_cache(maxsize=1)
def _vmem_limit():
    """Generation-aware scoped-VMEM budget: 48 MiB is safe under v7x's 64 MiB
    physical VMEM; allow more on v5e/v6e (128 MiB)."""
    limit = 48 * 1024 * 1024
    try:
        cap = int(pltpu.get_tpu_info().vmem_capacity_bytes)
        limit = max(limit, min(cap - 24 * 1024 * 1024, 100 * 1024 * 1024))
    except Exception:
        pass
    return limit


# ----------------------------------------------------------------------------
# Pallas kernels
# ----------------------------------------------------------------------------
def _matmul_bias_kernel(x_ref, w_ref, b_ref, o_ref):
    # x_ref: (TM, K) bf16   w_ref: (K, Cp) bf16   b_ref: (1, Cp) f32 (BN folded)
    y = jnp.dot(x_ref[...], w_ref[...], preferred_element_type=jnp.float32)
    o_ref[...] = (y + b_ref[...]).astype(o_ref.dtype)


def _block_kernel(x_ref, w1_ref, b1_ref, w9_ref, b9_ref, w2_ref, b2_ref,
                  o_ref, hpad_ref, *, Ho, Wo):
    """One full EfficientFormerV2Block (no-attention config) per grid step:
         fc1 (1x1 conv + BN + GELU)  [MXU]
      -> mid (3x3 depthwise + BN + GELU) via zero-padded VMEM scratch [VPU]
      -> fc2 (1x1 conv + BN + LayerScale) + residual add            [MXU]
    x_ref/o_ref: (Ho, Wo, Cp) bf16.  Padded channel lanes stay exactly zero."""
    Cp = x_ref.shape[-1]
    Hd = w1_ref.shape[-1]                       # hid_p

    x2d = x_ref[...].reshape(Ho * Wo, Cp)

    # ---- fc1: 1x1 conv + folded BN + GELU (f32 accumulation) ----
    h = jnp.dot(x2d, w1_ref[...], preferred_element_type=jnp.float32)
    h = _gelu(h + b1_ref[...])

    # ---- mid: 3x3 depthwise, padding=1, folded BN + GELU ----
    # Zero the halo scratch (keeps borders zero regardless of grid/core split),
    # then store the fc1 output into its interior at row offset 1 (untiled dim)
    # and column offset 8 (sublane-aligned store).
    hpad_ref[...] = jnp.zeros(hpad_ref.shape, hpad_ref.dtype)
    hpad_ref[1:Ho + 1, 8:8 + Wo, :] = h.reshape(Ho, Wo, Hd)
    xp = hpad_ref[...]                          # (Ho+2, Wo+9, Hd) f32

    acc = jnp.zeros((Ho, Wo, Hd), jnp.float32) + b9_ref[...]
    for ky in range(3):
        for kx in range(3):
            k = ky * 3 + kx
            tap = xp[ky:ky + Ho, 7 + kx:7 + kx + Wo, :]
            acc = acc + tap * w9_ref[k:k + 1, :]
    h2 = _gelu(acc).astype(jnp.bfloat16).reshape(Ho * Wo, Hd)

    # ---- fc2: 1x1 conv + folded BN + folded LayerScale + residual ----
    y = jnp.dot(h2, w2_ref[...], preferred_element_type=jnp.float32)
    y = y + b2_ref[...] + x2d.astype(jnp.float32)
    o_ref[...] = y.reshape(Ho, Wo, Cp).astype(o_ref.dtype)


# ----------------------------------------------------------------------------
# Pallas wrappers
# ----------------------------------------------------------------------------
def _matmul_bias(x2d, w, b, *, out_dtype=jnp.bfloat16, tile_m_max=1024,
                 min_steps=4):
    """(M, K) @ (K, Cp) + folded bias; Cp lane-dense; >= min_steps grid steps."""
    M, K = x2d.shape
    Cp = w.shape[1]

    nt = max(min_steps, pl.cdiv(M, tile_m_max))
    tile_m = _round_up(pl.cdiv(M, nt), 8)
    Mp = nt * tile_m
    if Mp != M:                                   # cdiv-style row padding
        x2d = jnp.pad(x2d, ((0, Mp - M), (0, 0)))

    out = pl.pallas_call(
        _matmul_bias_kernel,
        out_shape=jax.ShapeDtypeStruct((Mp, Cp), out_dtype),
        grid_spec=pltpu.PrefetchScalarGridSpec(
            num_scalar_prefetch=0,
            grid=(nt,),
            in_specs=[
                pl.BlockSpec((tile_m, K), lambda i: (i, 0)),   # activations
                pl.BlockSpec((K, Cp), lambda i: (0, 0)),        # folded weight
                pl.BlockSpec((1, Cp), lambda i: (0, 0)),        # folded bias
            ],
            out_specs=pl.BlockSpec((tile_m, Cp), lambda i: (i, 0)),
        ),
        compiler_params=pltpu.CompilerParams(
            dimension_semantics=("parallel",),
            vmem_limit_bytes=_vmem_limit()),
    )(x2d, w, b)
    return out if Mp == M else out[:M]


def _fused_block(x_img, bp, *, out_dtype=jnp.bfloat16):
    """x_img: (N, Ho, Wo, Cp) bf16; one grid step per image."""
    N, Ho, Wo, Cp = x_img.shape
    Hd = bp['w1'].shape[1]
    kernel = functools.partial(_block_kernel, Ho=Ho, Wo=Wo)
    return pl.pallas_call(
        kernel,
        out_shape=jax.ShapeDtypeStruct((N, Ho, Wo, Cp), out_dtype),
        grid_spec=pltpu.PrefetchScalarGridSpec(
            num_scalar_prefetch=0,
            grid=(N,),
            in_specs=[
                pl.BlockSpec((None, Ho, Wo, Cp), lambda n: (n, 0, 0, 0)),
                pl.BlockSpec((Cp, Hd), lambda n: (0, 0)),   # fc1 w (folded)
                pl.BlockSpec((1, Hd), lambda n: (0, 0)),    # fc1 b
                pl.BlockSpec((9, Hd), lambda n: (0, 0)),    # dw taps (folded)
                pl.BlockSpec((1, Hd), lambda n: (0, 0)),    # dw b
                pl.BlockSpec((Hd, Cp), lambda n: (0, 0)),   # fc2 w (BN+LS folded)
                pl.BlockSpec((1, Cp), lambda n: (0, 0)),    # fc2 b
            ],
            out_specs=pl.BlockSpec((None, Ho, Wo, Cp), lambda n: (n, 0, 0, 0)),
            scratch_shapes=[pltpu.VMEM((Ho + 2, Wo + 9, Hd), jnp.float32)],
        ),
        compiler_params=pltpu.CompilerParams(
            dimension_semantics=("parallel",),
            vmem_limit_bytes=_vmem_limit()),
    )(x_img, bp['w1'], bp['b1'], bp['w9'], bp['b9'], bp['w2'], bp['b2'])


# ----------------------------------------------------------------------------
# One-time parameter preparation (folding / transposes / padding / casts)
# ----------------------------------------------------------------------------
def prepare_stage_params(params, *, compute_dtype=jnp.bfloat16):
    p_ds = params['downsample']
    dim_out, cin = p_ds['conv_w'].shape[0], p_ds['conv_w'].shape[1]
    dim_p = _round_up(dim_out, LANE)

    # Downsample 3x3 s2 conv as im2col matmul weight: (9*Cin, dim_p), K unpadded.
    wd = jnp.transpose(p_ds['conv_w'], (2, 3, 1, 0)).reshape(9 * cin, dim_out)
    wd, bd = _fold_bn(wd.astype(jnp.float32), p_ds['conv_b'], p_ds['bn_g'],
                      p_ds['bn_b'], p_ds['bn_m'], p_ds['bn_v'])
    wd = _pad_dim(wd, 1, dim_p).astype(compute_dtype)
    bd = _pad_dim(bd, 0, dim_p).reshape(1, dim_p).astype(jnp.float32)

    blocks = []
    for blk in params['blocks']:
        hid = blk['fc1_w'].shape[0]
        hid_p = _round_up(hid, LANE)

        w1 = blk['fc1_w'].reshape(hid, dim_out).T.astype(jnp.float32)
        w1, b1 = _fold_bn(w1, blk['fc1_b'], blk['fc1_bn_g'], blk['fc1_bn_b'],
                          blk['fc1_bn_m'], blk['fc1_bn_v'])
        w1 = _pad_dim(_pad_dim(w1, 0, dim_p), 1, hid_p).astype(compute_dtype)
        b1 = _pad_dim(b1, 0, hid_p).reshape(1, hid_p).astype(jnp.float32)

        w9 = blk['mid_w'].reshape(hid, 9).T.astype(jnp.float32)     # (9, hid)
        w9, b9 = _fold_bn(w9, blk['mid_b'], blk['mid_bn_g'], blk['mid_bn_b'],
                          blk['mid_bn_m'], blk['mid_bn_v'])
        w9 = _pad_dim(w9, 1, hid_p).astype(jnp.float32)
        b9 = _pad_dim(b9, 0, hid_p).reshape(1, hid_p).astype(jnp.float32)

        w2 = blk['fc2_w'].reshape(dim_out, hid).T.astype(jnp.float32)
        w2, b2 = _fold_bn(w2, blk['fc2_b'], blk['fc2_bn_g'], blk['fc2_bn_b'],
                          blk['fc2_bn_m'], blk['fc2_bn_v'],
                          post_scale=blk['ls_gamma'])
        w2 = _pad_dim(_pad_dim(w2, 0, hid_p), 1, dim_p).astype(compute_dtype)
        b2 = _pad_dim(b2, 0, dim_p).reshape(1, dim_p).astype(jnp.float32)

        blocks.append(dict(w1=w1, b1=b1, w9=w9, b9=b9, w2=w2, b2=b2))

    return dict(ds_w=wd, ds_b=bd, blocks=blocks,
                cin=cin, dim_out=dim_out, dim_p=dim_p)


# ----------------------------------------------------------------------------
# Stage forward (Pallas)
# ----------------------------------------------------------------------------
def efficientformer_v2_stage_prepared(x_nchw, prepped, *,
                                      compute_dtype=jnp.bfloat16):
    N, Cin, H, W = x_nchw.shape
    dim_out, dim_p = prepped['dim_out'], prepped['dim_p']
    Ho = (H - 1) // 2 + 1
    Wo = (W - 1) // 2 + 1

    # NCHW -> NHWC once for the whole stage; bf16; channels un-padded here.
    x = jnp.transpose(x_nchw, (0, 2, 3, 1)).astype(compute_dtype)

    # --- Downsample: ConvNorm(dim, dim_out, k=3, s=2, p=1) via im2col + matmul
    #     (K = 9*Cin, no per-tap lane padding).
    xp = jnp.pad(x, ((0, 0), (1, 1), (1, 1), (0, 0)))
    taps = []
    for dy in range(3):
        for dx in range(3):
            taps.append(xp[:, dy:dy + 2 * Ho - 1:2, dx:dx + 2 * Wo - 1:2, :])
    patches = jnp.concatenate(taps, axis=-1).reshape(N * Ho * Wo, 9 * Cin)
    y = _matmul_bias(patches, prepped['ds_w'], prepped['ds_b'],
                     out_dtype=compute_dtype)
    y = y.reshape(N, Ho, Wo, dim_p)

    # --- Blocks: one fused Pallas kernel per block (fc1 + dw3x3 + fc2 + res).
    for bp in prepped['blocks']:
        y = _fused_block(y, bp, out_dtype=compute_dtype)

    out = y[..., :dim_out]
    return jnp.transpose(out, (0, 3, 1, 2)).astype(x_nchw.dtype)  # NHWC->NCHW


def efficientformer_v2_stage(x_nchw, params, *, compute_dtype=jnp.bfloat16):
    prepped = prepare_stage_params(params, compute_dtype=compute_dtype)
    return efficientformer_v2_stage_prepared(x_nchw, prepped,
                                             compute_dtype=compute_dtype)


# ----------------------------------------------------------------------------
# Pure-JAX reference (f32, NCHW, exact-erf GELU — PyTorch semantics)
# ----------------------------------------------------------------------------
def _ref_conv_bn(x, w, b, g, be, m, v, *, stride=1, padding=0, groups=1,
                 act=False):
    y = jax.lax.conv_general_dilated(
        x, w, window_strides=(stride, stride),
        padding=((padding, padding), (padding, padding)),
        dimension_numbers=('NCHW', 'OIHW', 'NCHW'),
        feature_group_count=groups)
    y = y + b[None, :, None, None]
    s = g * jax.lax.rsqrt(v + BN_EPS)
    y = (y - m[None, :, None, None]) * s[None, :, None, None] \
        + be[None, :, None, None]
    if act:
        y = jax.nn.gelu(y, approximate=False)
    return y


def stage_reference(x, params):
    d = params['downsample']
    y = _ref_conv_bn(x, d['conv_w'], d['conv_b'], d['bn_g'], d['bn_b'],
                     d['bn_m'], d['bn_v'], stride=2, padding=1)
    for blk in params['blocks']:
        hid = blk['fc1_w'].shape[0]
        h = _ref_conv_bn(y, blk['fc1_w'], blk['fc1_b'], blk['fc1_bn_g'],
                         blk['fc1_bn_b'], blk['fc1_bn_m'], blk['fc1_bn_v'],
                         act=True)
        h = _ref_conv_bn(h, blk['mid_w'], blk['mid_b'], blk['mid_bn_g'],
                         blk['mid_bn_b'], blk['mid_bn_m'], blk['mid_bn_v'],
                         padding=1, groups=hid, act=True)
        h = _ref_conv_bn(h, blk['fc2_w'], blk['fc2_b'], blk['fc2_bn_g'],
                         blk['fc2_bn_b'], blk['fc2_bn_m'], blk['fc2_bn_v'])
        y = y + blk['ls_gamma'][None, :, None, None] * h
    return y


# ----------------------------------------------------------------------------
# Deterministic synthetic parameters
# ----------------------------------------------------------------------------
def make_stage_params(key, dim, dim_out, depth, mlp_ratio=4.0):
    hidden = int(dim_out * mlp_ratio)
    keys = iter(jax.random.split(key, 16 + 32 * depth))

    def nrm(shape, scale=0.1):
        return scale * jax.random.normal(next(keys), shape, dtype=jnp.float32)

    def bn(c):
        return dict(g=1.0 + nrm((c,)), b=nrm((c,)), m=nrm((c,)),
                    v=jnp.abs(1.0 + nrm((c,))))

    ds = dict(conv_w=nrm((dim_out, dim, 3, 3)), conv_b=nrm((dim_out,)))
    ds.update({'bn_' + k: v for k, v in bn(dim_out).items()})

    blocks = []
    for _ in range(depth):
        blk = dict(
            fc1_w=nrm((hidden, dim_out, 1, 1)), fc1_b=nrm((hidden,)),
            mid_w=nrm((hidden, 1, 3, 3)), mid_b=nrm((hidden,)),
            fc2_w=nrm((dim_out, hidden, 1, 1)), fc2_b=nrm((dim_out,)),
            # Module init for LayerScale is 1e-5; use O(1) values so the test
            # actually exercises the MLP path (semantics are unchanged).
            ls_gamma=0.5 + jax.random.uniform(next(keys), (dim_out,),
                                              dtype=jnp.float32),
        )
        for name, c in (('fc1', hidden), ('mid', hidden), ('fc2', dim_out)):
            blk.update({f'{name}_bn_{k}': v for k, v in bn(c).items()})
        blocks.append(blk)
    return dict(downsample=ds, blocks=blocks)


if __name__ == "__main__":
    key = jax.random.PRNGKey(0)
    k_x, k_p = jax.random.split(key)

    N, dim, H, W = 2, 4, 16, 16
    dim_out, depth = 8, 2

    x = jax.random.normal(k_x, (N, dim, H, W), dtype=jnp.float32)
    params = make_stage_params(k_p, dim, dim_out, depth)

    prepped = prepare_stage_params(params)      # one-time weight prep (hoisted)
    out = efficientformer_v2_stage_prepared(x, prepped)
    out = jax.block_until_ready(out)

    ref = stage_reference(x, params)
    assert out.shape == (N, dim_out, H // 2, W // 2), out.shape
    err = float(jnp.max(jnp.abs(out.astype(jnp.float32) - ref)))
    assert jnp.allclose(out.astype(jnp.float32), ref, rtol=5e-2, atol=5e-2), err

    print("KERNEL_OK")
</pallas_src>

<mosaic_0001>
module attributes {stable_mosaic.version = 11 : i64} {
  func.func @_matmul_bias_kernel(%arg0: i32, %arg1: memref<32x36xbf16, #tpu.memory_space<vmem>>, %arg2: memref<36x128xbf16, #tpu.memory_space<vmem>>, %arg3: memref<1x128xf32, #tpu.memory_space<vmem>>, %arg4: memref<32x128xbf16, #tpu.memory_space<vmem>>) attributes {dimension_semantics = [#tpu.dimension_semantics<parallel>], iteration_bounds = array<i64: 4>, scalar_prefetch = 0 : i64, scratch_operands = 0 : i64, tpu.core_type = #tpu.core_type<tc>, window_params = [{transform_indices = @transform_0, window_bounds = array<i64: 32, 36>}, {pipeline_mode = #tpu.pipeline_mode<synchronous>, transform_indices = @transform_1, window_bounds = array<i64: 36, 128>}, {pipeline_mode = #tpu.pipeline_mode<synchronous>, transform_indices = @transform_2, window_bounds = array<i64: 1, 128>}, {transform_indices = @transform_3, window_bounds = array<i64: 32, 128>}]} {
    %c0 = arith.constant 0 : index
    %c0_0 = arith.constant 0 : index
    %0 = vector.load %arg1[%c0, %c0_0] : memref<32x36xbf16, #tpu.memory_space<vmem>>, vector<32x36xbf16>
    %c0_1 = arith.constant 0 : index
    %c0_2 = arith.constant 0 : index
    %1 = vector.load %arg2[%c0_1, %c0_2] : memref<36x128xbf16, #tpu.memory_space<vmem>>, vector<36x128xbf16>
    %cst = arith.constant dense<0.000000e+00> : vector<32x128xf32>
    %2 = tpu.matmul %0, %1, %cst {dimension_numbers = #tpu.dot_dimension_numbers<[1], [0], [0], [1], [0, 0, 1, 1], [], []>} : vector<32x36xbf16>, vector<36x128xbf16>, vector<32x128xf32> -> vector<32x128xf32>
    %c0_3 = arith.constant 0 : index
    %c0_4 = arith.constant 0 : index
    %3 = vector.load %arg3[%c0_3, %c0_4] : memref<1x128xf32, #tpu.memory_space<vmem>>, vector<1x128xf32>
    %4 = vector.broadcast %3 : vector<1x128xf32> to vector<32x128xf32>
    %5 = arith.addf %2, %4 : vector<32x128xf32>
    %6 = arith.truncf %5 : vector<32x128xf32> to vector<32x128xbf16>
    %c0_5 = arith.constant 0 : index
    %c0_6 = arith.constant 0 : index
    %7 = vector.load %arg4[%c0_5, %c0_6] : memref<32x128xbf16, #tpu.memory_space<vmem>>, vector<32x128xbf16>
    tpu.vector_store %arg4[%c0_5, %c0_6], %6 {strides = array<i32>} : memref<32x128xbf16, #tpu.memory_space<vmem>>, vector<32x128xbf16>,
    return
  }
  func.func @transform_0(%arg0: i32) -> (i32, i32) {
    %c0_i32 = arith.constant 0 : i32
    %c0_i32_0 = arith.constant 0 : i32
    return %arg0, %c0_i32 : i32, i32
  }
  func.func @transform_1(%arg0: i32) -> (i32, i32) {
    %c0_i32 = arith.constant 0 : i32
    %c0_i32_0 = arith.constant 0 : i32
    %c0_i32_1 = arith.constant 0 : i32
    return %c0_i32, %c0_i32_0 : i32, i32
  }
  func.func @transform_2(%arg0: i32) -> (i32, i32) {
    %c0_i32 = arith.constant 0 : i32
    %c0_i32_0 = arith.constant 0 : i32
    %c0_i32_1 = arith.constant 0 : i32
    return %c0_i32, %c0_i32_0 : i32, i32
  }
  func.func @transform_3(%arg0: i32) -> (i32, i32) {
    %c0_i32 = arith.constant 0 : i32
    %c0_i32_0 = arith.constant 0 : i32
    return %arg0, %c0_i32 : i32, i32
  }
}

</mosaic_0001>

<llo_original>
// kernel: tpu_custom_call.1
$region0: #{tpu_custom_call.1}
  #allocation0 [shape = 'u32[]', space=smem, size = 0x4, offset = 0x4, fixed_abs, tag = 'smem constant byte address 0x4 - core index']
  #allocation1 [shape = 'u32[144,128]{1,0:T(1,128)}', space=vmem, size = 0x12000, scoped, tag = 'internal scratch']
  %s0 = inlined_call_operand.vmem [shape: bf16[128,36], index: 0, kind: input, shape index: {}]
  %s1 = inlined_call_operand.vmem [shape: bf16[36,128], index: 1, kind: input, shape index: {}]
  %s2 = inlined_call_operand.vmem [shape: f32[1,128], index: 2, kind: input, shape index: {}]
  %s3 = inlined_call_operand.hbm [shape: bf16[128,128], index: 3, kind: output, shape index: {}]
  %s4 = sld [smem:[#allocation0]]
  $region45: #{tpu_custom_call.1} parent=0
    _
  %s6 = ssub.s32 1, %s4
  %s7 = scalar_select 0, %s6, %s4
  $region1: #{tpu_custom_call.1} parent=0
    #allocation2 [shape = 'u8[16384]{0}', space=vmem, size = 0x4000, scoped, tag = 'output window, operand 0']
    #allocation3 [shape = 's32[2]{0}', space=sflag, size = 0x8, scoped, tag = 'scoped memory for tpu_custom_call.1']
    %8 = vsyncpa [#allocation3], 0
    %s9 = scalar_lea.sflag [#allocation3], 1
    %10 = vsyncpa %s9, 0
    loop: start=0, step=1, limit=6
    $region2: #{tpu_custom_call.1} parent=1 // loop_pre_header
      _
    $region3: #{tpu_custom_call.1} parent=1 // loop_header
      %s12 = sphi 0, %s16
      %p13 = scmp.ge.s32.totalorder %s12, 6
      %s22 = sphi 0, %s24
      %s25 = sphi 0, %s22
      %s26 = sphi 0, %s25
      %s42 = sphi 0, %s26
      %s46 = sphi 0, %s46
      %s48 = sphi 0, %s46
      %s49 = sphi 0, %s48
      %s63 = sphi 0, %s49
      %s67 = sphi 0, %s67
      %s69 = sphi 0, %s67
      %s70 = sphi 0, %s69
      %s84 = sphi 0, %s70
      %s90 = sphi 0, %s92
      %s93 = sphi 0, %s90
      %s94 = sphi 0, %s93
      %s110 = sphi 0, %s94
    $region4: #{tpu_custom_call.1} parent=1 // loop_header_branch
      %15 = sbr.rel (%p13) target = $region8
    $region5: #{tpu_custom_call.1} parent=1 // loop_body
      %s17 = ssub.s32 %s12, 1
      %s18 = ssub.s32 %s12, 2
      %s19 = sadd.s32 %s12, 1
      %s20 = ssub.s32 %s12, %s19
      %p21 = scmp.eq.s32.totalorder %s20, 0
      %s23 = sadd.s32 %s22, 1
      %s24 = scalar_select %p21, %s22, %s23
      %p27 = pneg %p21
      %p28 = scmp.eq.s32.totalorder %s12, 3
      %p29 = por %p27, %p28
      %p30 = scmp.ne.s32.totalorder %s22, %s25
      %p31 = scmp.eq.s32.totalorder %s12, 0
      %p32 = por %p30, %p31
      %p33 = scmp.ne.s32.totalorder %s22, %s25
      %p34 = scmp.eq.s32.totalorder %s17, 3
      %p35 = por %p33, %p34
      %p36 = scmp.ne.s32.totalorder %s25, %s26
      %p37 = scmp.eq.s32.totalorder %s17, 0
      %p38 = por %p36, %p37
      %p39 = scmp.ne.s32.totalorder %s25, %s26
      %p40 = scmp.eq.s32.totalorder %s18, 3
      %p41 = por %p39, %p40
      %p43 = scmp.ne.s32.totalorder %s26, %s42
      %p44 = scmp.eq.s32.totalorder %s18, 0
      %p45 = por %p43, %p44
      %s47 = sadd.s32 %s46, 1
      %p50 = scmp.eq.s32.totalorder %s12, 3
      %p51 = scmp.ne.s32.totalorder %s46, %s48
      %p52 = scmp.eq.s32.totalorder %s12, 0
      %p53 = por %p51, %p52
      %p54 = scmp.ne.s32.totalorder %s46, %s48
      %p55 = scmp.eq.s32.totalorder %s17, 3
      %p56 = por %p54, %p55
      %p57 = scmp.ne.s32.totalorder %s48, %s49
      %p58 = scmp.eq.s32.totalorder %s17, 0
      %p59 = por %p57, %p58
      %p60 = scmp.ne.s32.totalorder %s48, %s49
      %p61 = scmp.eq.s32.totalorder %s18, 3
      %p62 = por %p60, %p61
      %p64 = scmp.ne.s32.totalorder %s49, %s63
      %p65 = scmp.eq.s32.totalorder %s18, 0
      %p66 = por %p64, %p65
      %s68 = sadd.s32 %s67, 1
      %p71 = scmp.eq.s32.totalorder %s12, 3
      %p72 = scmp.ne.s32.totalorder %s67, %s69
      %p73 = scmp.eq.s32.totalorder %s12, 0
      %p74 = por %p72, %p73
      %p75 = scmp.ne.s32.totalorder %s67, %s69
      %p76 = scmp.eq.s32.totalorder %s17, 3
      %p77 = por %p75, %p76
      %p78 = scmp.ne.s32.totalorder %s69, %s70
      %p79 = scmp.eq.s32.totalorder %s17, 0
      %p80 = por %p78, %p79
      %p81 = scmp.ne.s32.totalorder %s69, %s70
      %p82 = scmp.eq.s32.totalorder %s18, 3
      %p83 = por %p81, %p82
      %p85 = scmp.ne.s32.totalorder %s70, %s84
      %p86 = scmp.eq.s32.totalorder %s18, 0
      %p87 = por %p85, %p86
      %s88 = ssub.s32 %s12, %s19
      %p89 = scmp.eq.s32.totalorder %s88, 0
      %s91 = sadd.s32 %s90, 1
      %s92 = scalar_select %p89, %s90, %s91
      %p95 = pneg %p89
      %p96 = scmp.eq.s32.totalorder %s12, 3
      %p97 = por %p95, %p96
      %p98 = scmp.ne.s32.totalorder %s90, %s93
      %p99 = scmp.eq.s32.totalorder %s12, 0
      %p100 = por %p98, %p99
      %p101 = scmp.ne.s32.totalorder %s90, %s93
      %p102 = scmp.eq.s32.totalorder %s17, 3
      %p103 = por %p101, %p102
      %p104 = scmp.ne.s32.totalorder %s93, %s94
      %p105 = scmp.eq.s32.totalorder %s17, 0
      %p106 = por %p104, %p105
      %p107 = scmp.ne.s32.totalorder %s93, %s94
      %p108 = scmp.eq.s32.totalorder %s18, 3
      %p109 = por %p107, %p108
      %p111 = scmp.ne.s32.totalorder %s94, %s110
      %p112 = scmp.eq.s32.totalorder %s18, 0
      %p113 = por %p111, %p112
      %p114 = scmp.le.s32.totalorder 1, %s12
      %p115 = scmp.lt.s32.totalorder %s12, 5
      %p116 = pnand %p114, %p115
      %p117 = pneg %p116
      // Predicated region
      $region9: #{tpu_custom_call.1} parent=5 // pred_check
        _
      $region10: #{tpu_custom_call.1} parent=5 // pred_check_branch
        %119 = sbr.rel (%p116) target = $region12
      $region11: #{tpu_custom_call.1} parent=5 // pred_region
        %s120 = ssub.s32 %s12, 1
        // Predicated region
        $region13: #{tpu_custom_call.1} parent=11 // pred_check
          %p121 = pneg %p59
        $region14: #{tpu_custom_call.1} parent=11 // pred_check_branch
          %123 = sbr.rel (%p121) target = $region16
        $region15: #{tpu_custom_call.1} parent=11 // pred_region
          _
        $region16: #{tpu_custom_call.1} parent=11 // pred_fallthru
          _
        // Predicated region
        $region17: #{tpu_custom_call.1} parent=11 // pred_check
          %p124 = pneg %p80
        $region18: #{tpu_custom_call.1} parent=11 // pred_check_branch
          %126 = sbr.rel (%p124) target = $region20
        $region19: #{tpu_custom_call.1} parent=11 // pred_region
          _
        $region20: #{tpu_custom_call.1} parent=11 // pred_fallthru
          _
      $region12: #{tpu_custom_call.1} parent=5 // pred_fallthru
        _
      %p127 = scmp.lt.s32.totalorder %s12, 4
      // Predicated region
      $region21: #{tpu_custom_call.1} parent=5 // pred_check
        %p128 = pneg %p127
      $region22: #{tpu_custom_call.1} parent=5 // pred_check_branch
        %130 = sbr.rel (%p128) target = $region24
      $region23: #{tpu_custom_call.1} parent=5 // pred_region
        // Predicated region
        $region25: #{tpu_custom_call.1} parent=23 // pred_check
          %p131 = pneg %p32
        $region26: #{tpu_custom_call.1} parent=23 // pred_check_branch
          %133 = sbr.rel (%p131) target = $region28
        $region27: #{tpu_custom_call.1} parent=23 // pred_region
          %s134 = smul.u32 4, %s12
          %p135 = scmp.lt.s32.totalorder %s134, 15
          %s136 = scalar_select %p135, %s134, 15
          %s137 = smul.addr %s136, 4
          %s138 = scalar_lea.vmem %s0, %s137
          %s139 = smul.u32 4, %s12
        $region28: #{tpu_custom_call.1} parent=23 // pred_fallthru
          _
      $region24: #{tpu_custom_call.1} parent=5 // pred_fallthru
        _
      %p140 = scmp.le.s32.totalorder 1, %s12
      %p141 = scmp.lt.s32.totalorder %s12, 5
      %p142 = pnand %p140, %p141
      %p143 = pneg %p142
      // Predicated region
      $region29: #{tpu_custom_call.1} parent=5 // pred_check
        _
      $region30: #{tpu_custom_call.1} parent=5 // pred_check_branch
        %145 = sbr.rel (%p142) target = $region32
      $region31: #{tpu_custom_call.1} parent=5 // pred_region
        %s146 = ssub.s32 %s12, 1
        %s147 = smul.u32 4, %s17
        %p148 = scmp.lt.s32.totalorder %s147, 15
        %s149 = scalar_select %p148, %s147, 15
        %s150 = smul.addr %s149, 4
        %s151 = scalar_lea.vmem %s0, %s150
        %p152 = pneg %p38
        %p153 = pneg %p35
        %p154 = pneg %p59
        %p155 = pneg %p56
        %p156 = pneg %p80
        %p157 = pneg %p77
        %p158 = pneg %p106
        %p159 = pneg %p103
        %s160 = sand.u32 %s93, 1
        %s161 = scalar_lea.sflag [#allocation3], %s160
        %s162 = sand.u32 %s93, 1
        %s163 = smul.addr %s162, 16
        %s164 = scalar_lea.vmem [#allocation2], %s163
        %s165 = smul.u32 4, %s17
        %p166 = scmp.lt.s32.totalorder %s165, 15
        %s167 = scalar_select %p166, %s165, 15
        %s168 = smul.addr %s167, 4
        %s169 = scalar_lea.vmem %s0, %s168
        %s170 = smul.u32 4, %s17
        %s171 = smul.u32 4, %s17
        %v173 = vld [vmem:[%s169] sm:$0xf]
        %v174 = vld [vmem:[%s169 + $0x4] sm:$0xf]
        %v175 = vld [vmem:[%s169 + $0x8] sm:$0xf]
        %v176 = vld [vmem:[%s169 + $0xc] sm:$0xf]
        %v177 = vld [vmem:[%s1] sm:$0xf]
        %v178 = vld [vmem:[%s1 + $0x4] sm:$0xf]
        %v179 = vld [vmem:[%s1 + $0x8] sm:$0xf]
        %v180 = vld [vmem:[%s1 + $0xc] sm:$0xf]
        %v181 = vld [vmem:[%s1 + $0x10] sm:$0x3]
        %v182 = vld [vmem:[%s2] sm:$0x1]
        %v184 = vlaneseq
        %v185 = vshrl.u32 %v184, 7
        %v186 = vsub.s32 0, %v185
        %v187 = vrot.slane %v182, %v186
        %v193 = vunpack.c.l.b16 %v173
        %v194 = vunpack.c.l.b16 %v174
        %v195 = vunpack.c.l.b16 %v175
        %v196 = vunpack.c.l.b16 %v176
        %v197 = vpack.c.b16 %v194, %v193
        %v198 = vpack.c.b16 %v196, %v195
        %v204 = vunpack.c.l.b16 %v177
        %v205 = vunpack.c.l.b16 %v178
        %v206 = vunpack.c.l.b16 %v179
        %v207 = vunpack.c.l.b16 %v180
        %v208 = vunpack.c.l.b16 %v181
        %v209 = vpack.c.b16 %v205, %v204
        %v210 = vpack.c.b16 %v207, %v206
        %v211 = vpack.c.b16 %v208, %v208
        %vm214 = vcmask 293888
        %v216 = vsel %vm214, %v197, 0
        %v219 = vsel %vm214, %v198, 0
        %vm221 = vcmask 1041408
        %v223 = vsel %vm221, %v211, 0
        %225 = vmatprep.subr.bf16.mxu0 0
        %226 = vmatpush1.bf16.msra.mxu0 %v209
        %227 = vmatprep.subr.bf16.mxu0 0
        %228 = vmatpush1.bf16.msra.mxu0 %v210
        %229 = vmatprep.subr.bf16.mxu0 0
        %230 = vmatpush1.bf16.msra.mxu0 %v223
        %231 = vmatprep.subr.bf16.mxu0 0
        %232 = vmatpush1.bf16.msra.mxu0 0
        %233 = vmatprep.subr.bf16.mxu0 0
        %234 = vmatpush1.bf16.msra.mxu0 0
        %235 = vmatprep.subr.bf16.mxu0 0
        %236 = vmatpush1.bf16.msra.mxu0 0
        %237 = vmatprep.subr.bf16.mxu0 0
        %238 = vmatpush1.bf16.msra.mxu0 0
        %239 = vmatprep.subr.bf16.mxu0 0
        %240 = vmatpush1.bf16.msra.mxu0 0
        %241 = vmatprep.subr.bf16.mxu0 0
        %242 = vmatpush1.bf16.msra.mxu0 0
        %243 = vmatprep.subr.bf16.mxu0 0
        %244 = vmatpush1.bf16.msra.mxu0 0
        %245 = vmatprep.subr.bf16.mxu0 0
        %246 = vmatpush1.bf16.msra.mxu0 0
        %247 = vmatprep.subr.bf16.mxu0 0
        %248 = vmatpush1.bf16.msra.mxu0 0
        %249 = vmatprep.subr.bf16.mxu0 0
        %250 = vmatpush1.bf16.msra.mxu0 0
        %251 = vmatprep.subr.bf16.mxu0 0
        %252 = vmatpush1.bf16.msra.mxu0 0
        %253 = vmatprep.subr.bf16.mxu0 0
        %254 = vmatpush1.bf16.msra.mxu0 0
        %255 = vmatprep.subr.bf16.mxu0 0
        %256 = vmatpush1.bf16.msra.mxu0 0
        %257 = vmatprep.mubr.bf16.mxu0 0
        %258 = vmatmul.mubr.bf16.gmra.mrb[0].mxu0 %v216
        %v259 = vpop.f32.mrb[0].mxu0
        %v260 = vadd.f32 %v187, %v259
        %v261 = vpop.f32.mrb[0].mxu0
        %v262 = vpop.f32.mrb[0].mxu0
        %v263 = vadd.f32 %v187, %v262
        %v264 = vpop.f32.mrb[0].mxu0
        %265 = vmatprep.mubr.bf16.mxu0 0
        %266 = vmatmul.mubr.bf16.gmra.mrb[0].mxu0 %v219
        %v267 = vpop.f32.mrb[0].mxu0
        %v268 = vadd.f32 %v187, %v267
        %v269 = vpop.f32.mrb[0].mxu0
        %v270 = vpop.f32.mrb[0].mxu0
        %v271 = vadd.f32 %v187, %v270
        %v272 = vpop.f32.mrb[0].mxu0
        %273 = vdwg.mxu0
        %v274 = vpack.c.bf16 %v263, %v260
        %v275 = vpack.c.bf16 %v271, %v268
        %v278 = vunpack.c.l.b16 %v274
        %v279 = vunpack.c.h.b16 %v274
        %v280 = vunpack.c.l.b16 %v275
        %v281 = vunpack.c.h.b16 %v275
        %v282 = vpack.c.b16 %v278, %v278
        %v283 = vpack.c.b16 %v279, %v279
        %v284 = vpack.c.b16 %v280, %v280
        %v285 = vpack.c.b16 %v281, %v281
        %290 = vst [vmem:[%s164] sm:$0xf] %v282
        %291 = vst [vmem:[%s164 + $0x4] sm:$0xf] %v283
        %292 = vst [vmem:[%s164 + $0x8] sm:$0xf] %v284
        %293 = vst [vmem:[%s164 + $0xc] sm:$0xf] %v285
        %s294 = sand.u32 %s93, 1
        %s295 = scalar_lea.sflag [#allocation3], %s294
        %s296 = sand.u32 %s93, 1
        %s297 = smul.addr %s296, 16
        %s298 = scalar_lea.vmem [#allocation2], %s297
        // Predicated region
        $region33: #{tpu_custom_call.1} parent=31 // pred_check
          %p299 = pneg %p103
        $region34: #{tpu_custom_call.1} parent=31 // pred_check_branch
          %301 = sbr.rel (%p299) target = $region36
        $region35: #{tpu_custom_call.1} parent=31 // pred_region
          %s302 = smul.u32 4, %s17
          %s304 = ssub.s32 256, 256
          %305 = vsyncadd %s295, %s304
          %s306 = smul.addr %s302, 64
          %s307 = scalar_lea.hbm %s3, %s306
          %s308 = sshll.u32 %s298, 4
          %s309 = int_to_ptr.vmem [resolvable:$true] %s308
          %314 = dma.vmem_to_hbm [thread:$0]  %s309, 256, %s307, %s295, 64, 64, 4
        $region36: #{tpu_custom_call.1} parent=31 // pred_fallthru
          _
      $region32: #{tpu_custom_call.1} parent=5 // pred_fallthru
        _
      %p315 = scmp.le.s32.totalorder 2, %s12
      // Predicated region
      $region37: #{tpu_custom_call.1} parent=5 // pred_check
        %p316 = pneg %p315
      $region38: #{tpu_custom_call.1} parent=5 // pred_check_branch
        %318 = sbr.rel (%p316) target = $region40
      $region39: #{tpu_custom_call.1} parent=5 // pred_region
        %s319 = ssub.s32 %s12, 2
        // Predicated region
        $region41: #{tpu_custom_call.1} parent=39 // pred_check
          %p320 = pneg %p109
        $region42: #{tpu_custom_call.1} parent=39 // pred_check_branch
          %322 = sbr.rel (%p320) target = $region44
        $region43: #{tpu_custom_call.1} parent=39 // pred_region
          %s323 = sand.u32 %s94, 1
          %s324 = scalar_lea.sflag [#allocation3], %s323
          %s325 = sand.u32 %s94, 1
          %s326 = smul.addr %s325, 16
          %s327 = scalar_lea.vmem [#allocation2], %s326
          %328 = dma.done %s324, 256
        $region44: #{tpu_custom_call.1} parent=39 // pred_fallthru
          _
      $region40: #{tpu_custom_call.1} parent=5 // pred_fallthru
        _
    $region6: #{tpu_custom_call.1} parent=1 // loop_footer
      %s16 = sadd.s32 1, %s12
    $region7: #{tpu_custom_call.1} parent=1 // loop_footer_branch
      %11 = sbr.rel target = $region3
    $region8: #{tpu_custom_call.1} parent=1 // loop_exit
      _
    %329 = vsyncpa [#allocation3], 1
    %s330 = scalar_lea.sflag [#allocation3], 1
    %331 = vsyncpa %s330, 1

</llo_original>
